<compile_context>
chip_gen: v5e
topology: v5e:2x2
jax: 0.10.0
libtpu: 0.0.40
codegen_flags: <defaults>
</compile_context>

<pallas_src>
import numpy as np
import jax
import jax.numpy as jnp
from jax.experimental import pallas as pl
from jax.experimental.pallas import tpu as pltpu  # noqa: F401  (kept for completeness)


def _tnoop_kernel(x_ref, o_ref):
    # x_ref and o_ref alias the same HBM buffer (input_output_aliases={0: 0});
    # an identity forward therefore requires no work and no data movement.
    del x_ref, o_ref


def tnoop_pallas(x):
    """TNoop.forward(x) == x, as a zero-copy (aliased) Pallas call."""
    # Degenerate cases (empty arrays / 0-d scalars): the identity is trivially
    # x itself and a pallas_call gains nothing -- return directly.
    if x.size == 0 or x.ndim == 0:
        return x

    return pl.pallas_call(
        _tnoop_kernel,
        out_shape=jax.ShapeDtypeStruct(x.shape, x.dtype),
        in_specs=[pl.BlockSpec(memory_space=pl.ANY)],
        out_specs=pl.BlockSpec(memory_space=pl.ANY),
        input_output_aliases={0: 0},
        # Advise XLA's scheduler that this custom call is free, so surrounding
        # ops can be scheduled around it without reserving time for it.
        cost_estimate=pl.CostEstimate(flops=0, transcendentals=0,
                                      bytes_accessed=0),
    )(x)


if __name__ == "__main__":
    # Small deterministic input consistent with the module (any shape works
    # for an identity forward): batch=2, channels=4, spatial=16x16.
    key = jax.random.PRNGKey(0)
    x = jax.random.normal(key, (2, 4, 16, 16), dtype=jnp.float32)

    out = tnoop_pallas(x)
    out = jax.block_until_ready(out)

    # Identity semantics: output must equal input exactly.
    np.testing.assert_array_equal(np.asarray(out), np.asarray(x))
    assert out.shape == x.shape and out.dtype == x.dtype

    print("KERNEL_OK")
</pallas_src>

<mosaic_0001>
module attributes {stable_mosaic.version = 11 : i64} {
  func.func @_tnoop_kernel(%arg0: memref<2x4x16x16xf32, #tpu.memory_space<any>>, %arg1: memref<2x4x16x16xf32, #tpu.memory_space<any>>) attributes {dimension_semantics = [], scalar_prefetch = 0 : i64, scratch_operands = 0 : i64, tpu.core_type = #tpu.core_type<tc>} {
    return
  }
}

</mosaic_0001>

<llo_original>
// kernel: tpu_custom_call.1
$region0: #{tpu_custom_call.1}
  #allocation0 [shape = 'u32[]', space=smem, size = 0x4, offset = 0x4, fixed_abs, tag = 'smem constant byte address 0x4 - core index']
  #allocation1 [shape = 'u32[72,128]{1,0:T(1,128)}', space=vmem, size = 0x9000, scoped, tag = 'internal scratch']
  %s0 = inlined_call_operand.hbm [shape: f32[2,4,16,16], index: 0, kind: input, shape index: {}, may-alias: {0,1}]
  %s1 = inlined_call_operand.hbm [shape: f32[2,4,16,16], index: 1, kind: output, shape index: {}, may-alias: {0,1}]
  %s2 = sld [smem:[#allocation0]]
  $region2: #{tpu_custom_call.1} parent=0
    _
  %s4 = ssub.s32 1, %s2
  %s5 = scalar_select 0, %s4, %s2

</llo_original>
